<compile_context>
chip_gen: v5e
topology: v5e:2x2
jax: 0.10.0
libtpu: 0.0.40
codegen_flags: <defaults>
</compile_context>

<pallas_src>
import functools

import jax
import jax.numpy as jnp
from jax.experimental import pallas as pl
from jax.experimental.pallas import tpu as pltpu


def _pick_tile(n, target=128):
    """Query-tile size: `target` if it divides n, else fall back to full n."""
    # TODO(synk): for production Whisper shapes (T=S=1500) pad T/S to a
    # multiple of 128 so tiles stay lane/sublane aligned instead of falling
    # back to the full extent.
    return target if (n % target == 0) else n


def _attn_kernel(x_ref, kv_ref, wq_ref, bq_ref, wk_ref, wv_ref, bv_ref,
                 qk_ref, wvh_ref, k_scr, v_scr, *, tq):
    t = pl.program_id(2)

    # Project this head's K / V once per (batch, head); reuse across q tiles.
    @pl.when(t == 0)
    def _():
        kv = kv_ref[0]                                             # (S, D)
        k_scr[...] = jnp.dot(kv, wk_ref[0],
                             preferred_element_type=jnp.float32)   # (S, dh)
        v_scr[...] = (jnp.dot(kv, wv_ref[0],
                              preferred_element_type=jnp.float32)
                      + bv_ref[0])                                 # (S, dh)

    row0 = pl.multiple_of(t * tq, tq)
    xq = x_ref[0, pl.ds(row0, tq), :]                              # (tq, D)
    # dh**-0.5 (== dual dh**-0.25) scale already folded into wq / bq.
    q = jnp.dot(xq, wq_ref[0], preferred_element_type=jnp.float32) + bq_ref[0]

    # Q @ K^T without an explicit transpose: contract head_dim of both sides.
    scores = jax.lax.dot_general(
        q, k_scr[...],
        dimension_numbers=(((1,), (1,)), ((), ())),
        preferred_element_type=jnp.float32)                        # (tq, S)
    qk_ref[0, 0] = scores                                          # pre-softmax logits (f32)

    # Softmax with deferred normalisation: normalise the (tq, dh) PV result
    # (T*dh elements) instead of the (tq, S) weights.
    m = jnp.max(scores, axis=-1, keepdims=True)
    p = jnp.exp(scores - m)
    l = jnp.sum(p, axis=-1, keepdims=True)
    pv = jnp.dot(p, v_scr[...], preferred_element_type=jnp.float32)  # (tq, dh)
    wvh_ref[0, 0] = pv * pl.reciprocal(l, approx=True)


def _out_proj_kernel(wvh_ref, wo_ref, bo_ref, out_ref, acc_ref):
    h = pl.program_id(2)

    @pl.when(h == 0)
    def _():
        acc_ref[...] = jnp.zeros_like(acc_ref)

    # out_tile += wv_h @ Wo_h   (reduction over heads, no concat/transpose)
    acc_ref[...] += jnp.dot(wvh_ref[0, 0], wo_ref[0],
                            preferred_element_type=jnp.float32)

    @pl.when(h == pl.num_programs(2) - 1)
    def _():
        out_ref[0] = (acc_ref[...] + bo_ref[...]).astype(out_ref.dtype)


def multi_head_attention(x, params, n_head, xa=None):
    """Returns (out, qk) matching the PyTorch module's forward (mask=None path)."""
    # TODO(synk): additive `mask` path not wired in (module is called with mask=None here).
    kv = x if xa is None else xa
    B, T, D = x.shape
    S = kv.shape[1]
    dh = D // n_head
    tq = _pick_tile(T)
    nt = T // tq

    # Fold the dual dh**-0.25 scaling of q and k into Wq / bq (one-time cost).
    scale2 = dh ** (-0.5)

    def per_head_w(w):   # (D, D) stored (in, out) -> (H, D, dh)
        return w.reshape(D, n_head, dh).transpose(1, 0, 2)

    def per_head_b(b):   # (1, D) -> (H, 1, dh)
        return b.reshape(n_head, 1, dh)

    wq_h = per_head_w(params["wq"]) * scale2
    bq_h = per_head_b(params["bq"]) * scale2
    wk_h = per_head_w(params["wk"])
    wvp_h = per_head_w(params["wv"])
    bv_h = per_head_b(params["bv"])
    wo_h = params["wo"].reshape(n_head, dh, D)   # rows of Wo grouped by head
    bo = params["bo"].reshape(1, D)

    cparams = pltpu.CompilerParams(
        dimension_semantics=("parallel", "parallel", "arbitrary"),
        vmem_limit_bytes=48 * 1024 * 1024,
    )

    # --- Kernel 1: per-(batch, head, q-tile) attention ----------------------
    qk, wvh = pl.pallas_call(
        functools.partial(_attn_kernel, tq=tq),
        out_shape=(
            jax.ShapeDtypeStruct((B, n_head, T, S), jnp.float32),   # logits
            jax.ShapeDtypeStruct((B, n_head, T, dh), jnp.float32),  # per-head wv
        ),
        grid_spec=pltpu.PrefetchScalarGridSpec(
            num_scalar_prefetch=0,
            grid=(B, n_head, nt),
            in_specs=[
                pl.BlockSpec((1, T, D), lambda b, h, t: (b, 0, 0)),     # x
                pl.BlockSpec((1, S, D), lambda b, h, t: (b, 0, 0)),     # kv source
                pl.BlockSpec((1, D, dh), lambda b, h, t: (h, 0, 0)),    # Wq_h (pre-scaled)
                pl.BlockSpec((1, 1, dh), lambda b, h, t: (h, 0, 0)),    # bq_h (pre-scaled)
                pl.BlockSpec((1, D, dh), lambda b, h, t: (h, 0, 0)),    # Wk_h
                pl.BlockSpec((1, D, dh), lambda b, h, t: (h, 0, 0)),    # Wv_h
                pl.BlockSpec((1, 1, dh), lambda b, h, t: (h, 0, 0)),    # bv_h
            ],
            out_specs=(
                pl.BlockSpec((1, 1, tq, S), lambda b, h, t: (b, h, t, 0)),
                pl.BlockSpec((1, 1, tq, dh), lambda b, h, t: (b, h, t, 0)),
            ),
            scratch_shapes=[
                pltpu.VMEM((S, dh), jnp.float32),   # K_h
                pltpu.VMEM((S, dh), jnp.float32),   # V_h
            ],
        ),
        compiler_params=cparams,
    )(x, kv, wq_h, bq_h, wk_h, wvp_h, bv_h)

    # --- Kernel 2: output projection as a reduction over heads --------------
    out = pl.pallas_call(
        _out_proj_kernel,
        out_shape=jax.ShapeDtypeStruct((B, T, D), x.dtype),
        grid_spec=pltpu.PrefetchScalarGridSpec(
            num_scalar_prefetch=0,
            grid=(B, nt, n_head),
            in_specs=[
                pl.BlockSpec((1, 1, tq, dh), lambda b, t, h: (b, h, t, 0)),  # wv_h
                pl.BlockSpec((1, dh, D), lambda b, t, h: (h, 0, 0)),         # Wo_h
                pl.BlockSpec((1, D), lambda b, t, h: (0, 0)),                # bo
            ],
            out_specs=pl.BlockSpec((1, tq, D), lambda b, t, h: (b, t, 0)),
            scratch_shapes=[pltpu.VMEM((tq, D), jnp.float32)],
        ),
        compiler_params=cparams,
    )(wvh, wo_h, bo)

    return out, qk


def init_params(key, n_state):
    """Deterministic parameter init (Linear weights stored pre-transposed as (in, out))."""
    ks = jax.random.split(key, 6)
    s = 1.0 / jnp.sqrt(n_state)
    return {
        "wq": jax.random.uniform(ks[0], (n_state, n_state), jnp.float32, -s, s),
        "bq": jax.random.uniform(ks[1], (1, n_state), jnp.float32, -s, s),
        "wk": jax.random.uniform(ks[2], (n_state, n_state), jnp.float32, -s, s),
        "wv": jax.random.uniform(ks[3], (n_state, n_state), jnp.float32, -s, s),
        "bv": jax.random.uniform(ks[4], (1, n_state), jnp.float32, -s, s),
        "wo": jax.random.uniform(ks[5], (n_state, n_state), jnp.float32, -s, s),
        "bo": jnp.zeros((1, n_state), jnp.float32),
    }


def reference(x, params, n_head, xa=None):
    """Pure-JAX reference mirroring the PyTorch forward (mask=None)."""
    kv = x if xa is None else xa
    B, T, D = x.shape
    dh = D // n_head
    q = x @ params["wq"] + params["bq"][0]
    k = kv @ params["wk"]
    v = kv @ params["wv"] + params["bv"][0]
    scale = dh ** (-0.25)
    qh = (q.reshape(B, T, n_head, dh).transpose(0, 2, 1, 3)) * scale
    kh = (k.reshape(B, -1, n_head, dh).transpose(0, 2, 3, 1)) * scale
    vh = v.reshape(B, -1, n_head, dh).transpose(0, 2, 1, 3)
    qk = jnp.einsum("bhtd,bhds->bhts", qh, kh).astype(jnp.float32)
    w = jax.nn.softmax(qk, axis=-1).astype(q.dtype)
    wv = jnp.einsum("bhts,bhsd->bhtd", w, vh).transpose(0, 2, 1, 3).reshape(B, T, D)
    return wv @ params["wo"] + params["bo"][0], qk


if __name__ == "__main__":
    B, T, n_state, n_head = 2, 8, 32, 4
    S_cross = 16
    key = jax.random.PRNGKey(0)
    kx, ka, kp = jax.random.split(key, 3)
    x = jax.random.normal(kx, (B, T, n_state), dtype=jnp.float32)
    xa = jax.random.normal(ka, (B, S_cross, n_state), dtype=jnp.float32)
    params = init_params(kp, n_state)

    # Self-attention path.
    out, qk = multi_head_attention(x, params, n_head)
    out, qk = jax.block_until_ready(out), jax.block_until_ready(qk)
    out_r, qk_r = reference(x, params, n_head)
    assert jnp.allclose(qk, qk_r, atol=1e-4, rtol=1e-4)
    assert jnp.allclose(out, out_r, atol=2e-3, rtol=2e-3)

    # Cross-attention path (xa provided).
    out_c, qk_c = multi_head_attention(x, params, n_head, xa=xa)
    out_c, qk_c = jax.block_until_ready(out_c), jax.block_until_ready(qk_c)
    out_cr, qk_cr = reference(x, params, n_head, xa=xa)
    assert jnp.allclose(qk_c, qk_cr, atol=1e-4, rtol=1e-4)
    assert jnp.allclose(out_c, out_cr, atol=2e-3, rtol=2e-3)

    print("KERNEL_OK")
</pallas_src>

<mosaic_0001>
module attributes {stable_mosaic.version = 11 : i64} {
  func.func @_attn_kernel(%arg0: i32, %arg1: i32, %arg2: i32, %arg3: memref<1x8x32xf32, #tpu.memory_space<vmem>>, %arg4: memref<1x8x32xf32, #tpu.memory_space<vmem>>, %arg5: memref<1x32x8xf32, #tpu.memory_space<vmem>>, %arg6: memref<1x1x8xf32, #tpu.memory_space<vmem>>, %arg7: memref<1x32x8xf32, #tpu.memory_space<vmem>>, %arg8: memref<1x32x8xf32, #tpu.memory_space<vmem>>, %arg9: memref<1x1x8xf32, #tpu.memory_space<vmem>>, %arg10: memref<1x1x8x8xf32, #tpu.memory_space<vmem>>, %arg11: memref<1x1x8x8xf32, #tpu.memory_space<vmem>>, %arg12: memref<8x8xf32, #tpu.memory_space<vmem>>, %arg13: memref<8x8xf32, #tpu.memory_space<vmem>>) attributes {dimension_semantics = [#tpu.dimension_semantics<parallel>, #tpu.dimension_semantics<parallel>, #tpu.dimension_semantics<arbitrary>], iteration_bounds = array<i64: 2, 4, 1>, scalar_prefetch = 0 : i64, scratch_operands = 2 : i64, tpu.core_type = #tpu.core_type<tc>, window_params = [{transform_indices = @transform_0, window_bounds = array<i64: 1, 8, 32>}, {transform_indices = @transform_1, window_bounds = array<i64: 1, 8, 32>}, {transform_indices = @transform_2, window_bounds = array<i64: 1, 32, 8>}, {transform_indices = @transform_3, window_bounds = array<i64: 1, 1, 8>}, {transform_indices = @transform_4, window_bounds = array<i64: 1, 32, 8>}, {transform_indices = @transform_5, window_bounds = array<i64: 1, 32, 8>}, {transform_indices = @transform_6, window_bounds = array<i64: 1, 1, 8>}, {transform_indices = @transform_7, window_bounds = array<i64: 1, 1, 8, 8>}, {transform_indices = @transform_8, window_bounds = array<i64: 1, 1, 8, 8>}]} {
    %c0_i32 = arith.constant 0 : i32
    %0 = arith.cmpi eq, %arg2, %c0_i32 : i32
    %1 = arith.extui %0 : i1 to i32
    %c0_i32_0 = arith.constant 0 : i32
    %2 = arith.cmpi ne, %1, %c0_i32_0 : i32
    scf.if %2 {
      %c0_24 = arith.constant 0 : index
      %c0_25 = arith.constant 0 : index
      %c0_26 = arith.constant 0 : index
      %35 = vector.load %arg4[%c0_24, %c0_25, %c0_26] : memref<1x8x32xf32, #tpu.memory_space<vmem>>, vector<1x8x32xf32>
      %36 = vector.shape_cast %35 : vector<1x8x32xf32> to vector<8x32xf32>
      %c0_27 = arith.constant 0 : index
      %c0_28 = arith.constant 0 : index
      %c0_29 = arith.constant 0 : index
      %37 = vector.load %arg7[%c0_27, %c0_28, %c0_29] : memref<1x32x8xf32, #tpu.memory_space<vmem>>, vector<1x32x8xf32>
      %38 = vector.shape_cast %37 : vector<1x32x8xf32> to vector<32x8xf32>
      %cst_30 = arith.constant dense<0.000000e+00> : vector<8x8xf32>
      %39 = tpu.matmul %36, %38, %cst_30 {dimension_numbers = #tpu.dot_dimension_numbers<[1], [0], [0], [1], [0, 0, 1, 1], [], []>} : vector<8x32xf32>, vector<32x8xf32>, vector<8x8xf32> -> vector<8x8xf32>
      %c0_31 = arith.constant 0 : index
      %c0_32 = arith.constant 0 : index
      %40 = vector.load %arg12[%c0_31, %c0_32] : memref<8x8xf32, #tpu.memory_space<vmem>>, vector<8x8xf32>
      tpu.vector_store %arg12[%c0_31, %c0_32], %39 {strides = array<i32>} : memref<8x8xf32, #tpu.memory_space<vmem>>, vector<8x8xf32>,
      %c0_33 = arith.constant 0 : index
      %c0_34 = arith.constant 0 : index
      %c0_35 = arith.constant 0 : index
      %41 = vector.load %arg8[%c0_33, %c0_34, %c0_35] : memref<1x32x8xf32, #tpu.memory_space<vmem>>, vector<1x32x8xf32>
      %42 = vector.shape_cast %41 : vector<1x32x8xf32> to vector<32x8xf32>
      %cst_36 = arith.constant dense<0.000000e+00> : vector<8x8xf32>
      %43 = tpu.matmul %36, %42, %cst_36 {dimension_numbers = #tpu.dot_dimension_numbers<[1], [0], [0], [1], [0, 0, 1, 1], [], []>} : vector<8x32xf32>, vector<32x8xf32>, vector<8x8xf32> -> vector<8x8xf32>
      %c0_37 = arith.constant 0 : index
      %c0_38 = arith.constant 0 : index
      %c0_39 = arith.constant 0 : index
      %44 = vector.load %arg9[%c0_37, %c0_38, %c0_39] : memref<1x1x8xf32, #tpu.memory_space<vmem>>, vector<1x1x8xf32>
      %45 = vector.shape_cast %44 : vector<1x1x8xf32> to vector<1x8xf32>
      %46 = vector.broadcast %45 : vector<1x8xf32> to vector<8x8xf32>
      %47 = arith.addf %43, %46 : vector<8x8xf32>
      %c0_40 = arith.constant 0 : index
      %c0_41 = arith.constant 0 : index
      %48 = vector.load %arg13[%c0_40, %c0_41] : memref<8x8xf32, #tpu.memory_space<vmem>>, vector<8x8xf32>
      tpu.vector_store %arg13[%c0_40, %c0_41], %47 {strides = array<i32>} : memref<8x8xf32, #tpu.memory_space<vmem>>, vector<8x8xf32>,
    } else {
    }
    %c8_i32 = arith.constant 8 : i32
    %3 = arith.muli %arg2, %c8_i32 : i32
    %4 = tpu.assume_multiple %3, 8 : i32
    %c0 = arith.constant 0 : index
    %5 = arith.index_cast %4 : i32 to index
    %c0_1 = arith.constant 0 : index
    %6 = vector.load %arg3[%c0, %5, %c0_1] : memref<1x8x32xf32, #tpu.memory_space<vmem>>, vector<1x8x32xf32>
    %7 = vector.shape_cast %6 : vector<1x8x32xf32> to vector<8x32xf32>
    %c0_2 = arith.constant 0 : index
    %c0_3 = arith.constant 0 : index
    %c0_4 = arith.constant 0 : index
    %8 = vector.load %arg5[%c0_2, %c0_3, %c0_4] : memref<1x32x8xf32, #tpu.memory_space<vmem>>, vector<1x32x8xf32>
    %9 = vector.shape_cast %8 : vector<1x32x8xf32> to vector<32x8xf32>
    %cst = arith.constant dense<0.000000e+00> : vector<8x8xf32>
    %10 = tpu.matmul %7, %9, %cst {dimension_numbers = #tpu.dot_dimension_numbers<[1], [0], [0], [1], [0, 0, 1, 1], [], []>} : vector<8x32xf32>, vector<32x8xf32>, vector<8x8xf32> -> vector<8x8xf32>
    %c0_5 = arith.constant 0 : index
    %c0_6 = arith.constant 0 : index
    %c0_7 = arith.constant 0 : index
    %11 = vector.load %arg6[%c0_5, %c0_6, %c0_7] : memref<1x1x8xf32, #tpu.memory_space<vmem>>, vector<1x1x8xf32>
    %12 = vector.shape_cast %11 : vector<1x1x8xf32> to vector<1x8xf32>
    %13 = vector.broadcast %12 : vector<1x8xf32> to vector<8x8xf32>
    %14 = arith.addf %10, %13 : vector<8x8xf32>
    %c0_8 = arith.constant 0 : index
    %c0_9 = arith.constant 0 : index
    %15 = vector.load %arg12[%c0_8, %c0_9] : memref<8x8xf32, #tpu.memory_space<vmem>>, vector<8x8xf32>
    %cst_10 = arith.constant dense<0.000000e+00> : vector<8x8xf32>
    %16 = tpu.matmul %14, %15, %cst_10 {dimension_numbers = #tpu.dot_dimension_numbers<[1], [1], [0], [0], [0, 0, 1, 0], [], []>} : vector<8x8xf32>, vector<8x8xf32>, vector<8x8xf32> -> vector<8x8xf32>
    %c0_11 = arith.constant 0 : index
    %c0_12 = arith.constant 0 : index
    %c0_13 = arith.constant 0 : index
    %c0_14 = arith.constant 0 : index
    %17 = vector.load %arg10[%c0_11, %c0_12, %c0_13, %c0_14] : memref<1x1x8x8xf32, #tpu.memory_space<vmem>>, vector<1x1x8x8xf32>
    %18 = vector.shape_cast %17 : vector<1x1x8x8xf32> to vector<8x8xf32>
    %19 = vector.shape_cast %16 : vector<8x8xf32> to vector<1x1x8x8xf32>
    tpu.vector_store %arg10[%c0_11, %c0_12, %c0_13, %c0_14], %19 {strides = array<i32>} : memref<1x1x8x8xf32, #tpu.memory_space<vmem>>, vector<1x1x8x8xf32>,
    %cst_15 = arith.constant dense<0xFF800000> : vector<8xf32>
    %20 = vector.multi_reduction <maximumf>, %16, %cst_15 [1] : vector<8x8xf32> to vector<8xf32>
    %21 = vector.shape_cast %20 : vector<8xf32> to vector<8x1xf32>
    %22 = vector.broadcast %21 : vector<8x1xf32> to vector<8x8xf32>
    %23 = arith.subf %16, %22 : vector<8x8xf32>
    %24 = math.exp %23 : vector<8x8xf32>
    %cst_16 = arith.constant dense<0.000000e+00> : vector<8xf32>
    %25 = vector.multi_reduction <add>, %24, %cst_16 [1] : vector<8x8xf32> to vector<8xf32>
    %26 = vector.shape_cast %25 : vector<8xf32> to vector<8x1xf32>
    %c0_17 = arith.constant 0 : index
    %c0_18 = arith.constant 0 : index
    %27 = vector.load %arg13[%c0_17, %c0_18] : memref<8x8xf32, #tpu.memory_space<vmem>>, vector<8x8xf32>
    %cst_19 = arith.constant dense<0.000000e+00> : vector<8x8xf32>
    %28 = tpu.matmul %24, %27, %cst_19 {dimension_numbers = #tpu.dot_dimension_numbers<[1], [0], [0], [1], [0, 0, 1, 1], [], []>} : vector<8x8xf32>, vector<8x8xf32>, vector<8x8xf32> -> vector<8x8xf32>
    %29 = tpu.reciprocal %26 {approx = true} : vector<8x1xf32> -> vector<8x1xf32>
    %30 = vector.broadcast %29 : vector<8x1xf32> to vector<8x8xf32>
    %31 = arith.mulf %28, %30 : vector<8x8xf32>
    %c0_20 = arith.constant 0 : index
    %c0_21 = arith.constant 0 : index
    %c0_22 = arith.constant 0 : index
    %c0_23 = arith.constant 0 : index
    %32 = vector.load %arg11[%c0_20, %c0_21, %c0_22, %c0_23] : memref<1x1x8x8xf32, #tpu.memory_space<vmem>>, vector<1x1x8x8xf32>
    %33 = vector.shape_cast %32 : vector<1x1x8x8xf32> to vector<8x8xf32>
    %34 = vector.shape_cast %31 : vector<8x8xf32> to vector<1x1x8x8xf32>
    tpu.vector_store %arg11[%c0_20, %c0_21, %c0_22, %c0_23], %34 {strides = array<i32>} : memref<1x1x8x8xf32, #tpu.memory_space<vmem>>, vector<1x1x8x8xf32>,
    return
  }
  func.func @transform_0(%arg0: i32, %arg1: i32, %arg2: i32) -> (i32, i32, i32) {
    %c0_i32 = arith.constant 0 : i32
    %c0_i32_0 = arith.constant 0 : i32
    %c0_i32_1 = arith.constant 0 : i32
    return %arg0, %c0_i32, %c0_i32_0 : i32, i32, i32
  }
  func.func @transform_1(%arg0: i32, %arg1: i32, %arg2: i32) -> (i32, i32, i32) {
    %c0_i32 = arith.constant 0 : i32
    %c0_i32_0 = arith.constant 0 : i32
    %c0_i32_1 = arith.constant 0 : i32
    return %arg0, %c0_i32, %c0_i32_0 : i32, i32, i32
  }
  func.func @transform_2(%arg0: i32, %arg1: i32, %arg2: i32) -> (i32, i32, i32) {
    %c0_i32 = arith.constant 0 : i32
    %c0_i32_0 = arith.constant 0 : i32
    %c0_i32_1 = arith.constant 0 : i32
    return %arg1, %c0_i32, %c0_i32_0 : i32, i32, i32
  }
  func.func @transform_3(%arg0: i32, %arg1: i32, %arg2: i32) -> (i32, i32, i32) {
    %c0_i32 = arith.constant 0 : i32
    %c0_i32_0 = arith.constant 0 : i32
    %c0_i32_1 = arith.constant 0 : i32
    return %arg1, %c0_i32, %c0_i32_0 : i32, i32, i32
  }
  func.func @transform_4(%arg0: i32, %arg1: i32, %arg2: i32) -> (i32, i32, i32) {
    %c0_i32 = arith.constant 0 : i32
    %c0_i32_0 = arith.constant 0 : i32
    %c0_i32_1 = arith.constant 0 : i32
    return %arg1, %c0_i32, %c0_i32_0 : i32, i32, i32
  }
  func.func @transform_5(%arg0: i32, %arg1: i32, %arg2: i32) -> (i32, i32, i32) {
    %c0_i32 = arith.constant 0 : i32
    %c0_i32_0 = arith.constant 0 : i32
    %c0_i32_1 = arith.constant 0 : i32
    return %arg1, %c0_i32, %c0_i32_0 : i32, i32, i32
  }
  func.func @transform_6(%arg0: i32, %arg1: i32, %arg2: i32) -> (i32, i32, i32) {
    %c0_i32 = arith.constant 0 : i32
    %c0_i32_0 = arith.constant 0 : i32
    %c0_i32_1 = arith.constant 0 : i32
    return %arg1, %c0_i32, %c0_i32_0 : i32, i32, i32
  }
  func.func @transform_7(%arg0: i32, %arg1: i32, %arg2: i32) -> (i32, i32, i32, i32) {
    %c0_i32 = arith.constant 0 : i32
    %c0_i32_0 = arith.constant 0 : i32
    return %arg0, %arg1, %arg2, %c0_i32 : i32, i32, i32, i32
  }
  func.func @transform_8(%arg0: i32, %arg1: i32, %arg2: i32) -> (i32, i32, i32, i32) {
    %c0_i32 = arith.constant 0 : i32
    %c0_i32_0 = arith.constant 0 : i32
    return %arg0, %arg1, %arg2, %c0_i32 : i32, i32, i32, i32
  }
}

</mosaic_0001>

<llo_original>
// kernel: tpu_custom_call.1
$region0: #{tpu_custom_call.1}
  #allocation0 [shape = 'u32[]', space=smem, size = 0x4, offset = 0x4, fixed_abs, tag = 'smem constant byte address 0x4 - core index']
  #allocation1 [shape = 'u32[72,128]{1,0:T(1,128)}', space=vmem, size = 0x9000, scoped, tag = 'internal scratch']
  #allocation2 [shape = 'f32[8,8]{1,0:T(8,128)}', space=vmem, size = 0x1000, scoped, tag = 'scratch operand']
  #allocation3 [shape = 'f32[8,8]{1,0:T(8,128)}', space=vmem, size = 0x1000, scoped, tag = 'scratch operand']
  %s0 = inlined_call_operand.vmem [shape: f32[2,8,32], index: 0, kind: input, shape index: {}]
  %s1 = inlined_call_operand.vmem [shape: f32[2,8,32], index: 1, kind: input, shape index: {}]
  %s2 = inlined_call_operand.vmem [shape: f32[4,32,8], index: 2, kind: input, shape index: {}]
  %s3 = inlined_call_operand.vmem [shape: f32[4,1,8], index: 3, kind: input, shape index: {}]
  %s4 = inlined_call_operand.vmem [shape: f32[4,32,8], index: 4, kind: input, shape index: {}]
  %s5 = inlined_call_operand.vmem [shape: f32[4,32,8], index: 5, kind: input, shape index: {}]
  %s6 = inlined_call_operand.vmem [shape: f32[4,1,8], index: 6, kind: input, shape index: {}]
  %s7 = inlined_call_operand.hbm [shape: f32[2,4,8,8], index: 7, kind: output, shape index: {0}]
  %s8 = inlined_call_operand.hbm [shape: f32[2,4,8,8], index: 8, kind: output, shape index: {1}]
  %9 = xla_tuple %s7, %s8
  %s10 = sld [smem:[#allocation0]]
  $region73: #{tpu_custom_call.1} parent=0
    _
  %s12 = ssub.s32 1, %s10
  %s13 = scalar_select 0, %s12, %s10
  $region1: #{tpu_custom_call.1} parent=0
    #allocation4 [shape = 'u8[8192]{0}', space=vmem, size = 0x2000, scoped, tag = 'output window, operand 0']
    #allocation5 [shape = 's32[2]{0}', space=sflag, size = 0x8, scoped, tag = 'scoped memory for tpu_custom_call.1']
    #allocation6 [shape = 'u8[8192]{0}', space=vmem, size = 0x2000, scoped, tag = 'output window, operand 1']
    #allocation7 [shape = 's32[2]{0}', space=sflag, size = 0x8, scoped, tag = 'scoped memory for tpu_custom_call.1']
    %14 = vsyncpa [#allocation5], 0
    %s15 = scalar_lea.sflag [#allocation5], 1
    %16 = vsyncpa %s15, 0
    %17 = vsyncpa [#allocation7], 0
    %s18 = scalar_lea.sflag [#allocation7], 1
    %19 = vsyncpa %s18, 0
    loop: start=0, step=1, limit=10
    $region2: #{tpu_custom_call.1} parent=1 // loop_pre_header
      _
    $region3: #{tpu_custom_call.1} parent=1 // loop_header
      %s21 = sphi 0, %s25
      %p22 = scmp.ge.s32.totalorder %s21, 10
      %s28 = sphi 0, %s47
      %s29 = sphi 0, %s43
      %s30 = sphi 0, %s39
      %s31 = sphi 0, %s28
      %s32 = sphi 0, %s29
      %s33 = sphi 0, %s30
      %s34 = sphi 0, %s31
      %s35 = sphi 0, %s32
      %s36 = sphi 0, %s33
      %s50 = sphi 0, %s52
      %s53 = sphi 0, %s50
      %s54 = sphi 0, %s53
      %s70 = sphi 0, %s54
      %s76 = sphi 0, %s78
      %s79 = sphi 0, %s76
      %s80 = sphi 0, %s79
      %s96 = sphi 0, %s80
      %s102 = sphi 0, %s104
      %s105 = sphi 0, %s102
      %s106 = sphi 0, %s105
      %s122 = sphi 0, %s106
      %s128 = sphi 0, %s130
      %s131 = sphi 0, %s128
      %s132 = sphi 0, %s131
      %s148 = sphi 0, %s132
      %s154 = sphi 0, %s156
      %s157 = sphi 0, %s154
      %s158 = sphi 0, %s157
      %s174 = sphi 0, %s158
      %s180 = sphi 0, %s182
      %s183 = sphi 0, %s180
      %s184 = sphi 0, %s183
      %s200 = sphi 0, %s184
      %s206 = sphi 0, %s208
      %s209 = sphi 0, %s206
      %s210 = sphi 0, %s209
      %s226 = sphi 0, %s210
      %s236 = sphi 0, %s238
      %s239 = sphi 0, %s236
      %s240 = sphi 0, %s239
      %s256 = sphi 0, %s240
      %s266 = sphi 0, %s268
      %s269 = sphi 0, %s266
      %s270 = sphi 0, %s269
      %s286 = sphi 0, %s270
    $region4: #{tpu_custom_call.1} parent=1 // loop_header_branch
      %24 = sbr.rel (%p22) target = $region8
    $region5: #{tpu_custom_call.1} parent=1 // loop_body
      %s26 = ssub.s32 %s21, 1
      %s27 = ssub.s32 %s21, 2
      %s37 = sadd.s32 1, %s30
      %p38 = scmp.ge.s32.totalorder %s37, 1
      %s39 = scalar_select %p38, 0, %s37
      %s40 = sadd.s32 1, %s29
      %s41 = scalar_select %p38, %s40, %s29
      %p42 = scmp.ge.s32.totalorder %s41, 4
      %s43 = scalar_select %p42, 0, %s41
      %s44 = sadd.s32 1, %s28
      %s45 = scalar_select %p42, %s44, %s28
      %p46 = scmp.ge.s32.totalorder %s45, 2
      %s47 = scalar_select %p46, 0, %s45
      %s48 = ssub.s32 %s28, %s47
      %p49 = scmp.eq.s32.totalorder %s48, 0
      %s51 = sadd.s32 %s50, 1
      %s52 = scalar_select %p49, %s50, %s51
      %p55 = pneg %p49
      %p56 = scmp.eq.s32.totalorder %s21, 7
      %p57 = por %p55, %p56
      %p58 = scmp.ne.s32.totalorder %s50, %s53
      %p59 = scmp.eq.s32.totalorder %s21, 0
      %p60 = por %p58, %p59
      %p61 = scmp.ne.s32.totalorder %s50, %s53
      %p62 = scmp.eq.s32.totalorder %s26, 7
      %p63 = por %p61, %p62
      %p64 = scmp.ne.s32.totalorder %s53, %s54
      %p65 = scmp.eq.s32.totalorder %s26, 0
      %p66 = por %p64, %p65
      %p67 = scmp.ne.s32.totalorder %s53, %s54
      %p68 = scmp.eq.s32.totalorder %s27, 7
      %p69 = por %p67, %p68
      %p71 = scmp.ne.s32.totalorder %s54, %s70
      %p72 = scmp.eq.s32.totalorder %s27, 0
      %p73 = por %p71, %p72
      %s74 = ssub.s32 %s28, %s47
      %p75 = scmp.eq.s32.totalorder %s74, 0
      %s77 = sadd.s32 %s76, 1
      %s78 = scalar_select %p75, %s76, %s77
      %p81 = pneg %p75
      %p82 = scmp.eq.s32.totalorder %s21, 7
      %p83 = por %p81, %p82
      %p84 = scmp.ne.s32.totalorder %s76, %s79
      %p85 = scmp.eq.s32.totalorder %s21, 0
      %p86 = por %p84, %p85
      %p87 = scmp.ne.s32.totalorder %s76, %s79
      %p88 = scmp.eq.s32.totalorder %s26, 7
      %p89 = por %p87, %p88
      %p90 = scmp.ne.s32.totalorder %s79, %s80
      %p91 = scmp.eq.s32.totalorder %s26, 0
      %p92 = por %p90, %p91
      %p93 = scmp.ne.s32.totalorder %s79, %s80
      %p94 = scmp.eq.s32.totalorder %s27, 7
      %p95 = por %p93, %p94
      %p97 = scmp.ne.s32.totalorder %s80, %s96
      %p98 = scmp.eq.s32.totalorder %s27, 0
      %p99 = por %p97, %p98
      %s100 = ssub.s32 %s29, %s43
      %p101 = scmp.eq.s32.totalorder %s100, 0
      %s103 = sadd.s32 %s102, 1
      %s104 = scalar_select %p101, %s102, %s103
      %p107 = pneg %p101
      %p108 = scmp.eq.s32.totalorder %s21, 7
      %p109 = por %p107, %p108
      %p110 = scmp.ne.s32.totalorder %s102, %s105
      %p111 = scmp.eq.s32.totalorder %s21, 0
      %p112 = por %p110, %p111
      %p113 = scmp.ne.s32.totalorder %s102, %s105
      %p114 = scmp.eq.s32.totalorder %s26, 7
      %p115 = por %p113, %p114
      %p116 = scmp.ne.s32.totalorder %s105, %s106
      %p117 = scmp.eq.s32.totalorder %s26, 0
      %p118 = por %p116, %p117
      %p119 = scmp.ne.s32.totalorder %s105, %s106
      %p120 = scmp.eq.s32.totalorder %s27, 7
      %p121 = por %p119, %p120
      %p123 = scmp.ne.s32.totalorder %s106, %s122
      %p124 = scmp.eq.s32.totalorder %s27, 0
      %p125 = por %p123, %p124
      %s126 = ssub.s32 %s29, %s43
      %p127 = scmp.eq.s32.totalorder %s126, 0
      %s129 = sadd.s32 %s128, 1
      %s130 = scalar_select %p127, %s128, %s129
      %p133 = pneg %p127
      %p134 = scmp.eq.s32.totalorder %s21, 7
      %p135 = por %p133, %p134
      %p136 = scmp.ne.s32.totalorder %s128, %s131
      %p137 = scmp.eq.s32.totalorder %s21, 0
      %p138 = por %p136, %p137
      %p139 = scmp.ne.s32.totalorder %s128, %s131
      %p140 = scmp.eq.s32.totalorder %s26, 7
      %p141 = por %p139, %p140
      %p142 = scmp.ne.s32.totalorder %s131, %s132
      %p143 = scmp.eq.s32.totalorder %s26, 0
      %p144 = por %p142, %p143
      %p145 = scmp.ne.s32.totalorder %s131, %s132
      %p146 = scmp.eq.s32.totalorder %s27, 7
      %p147 = por %p145, %p146
      %p149 = scmp.ne.s32.totalorder %s132, %s148
      %p150 = scmp.eq.s32.totalorder %s27, 0
      %p151 = por %p149, %p150
      %s152 = ssub.s32 %s29, %s43
      %p153 = scmp.eq.s32.totalorder %s152, 0
      %s155 = sadd.s32 %s154, 1
      %s156 = scalar_select %p153, %s154, %s155
      %p159 = pneg %p153
      %p160 = scmp.eq.s32.totalorder %s21, 7
      %p161 = por %p159, %p160
      %p162 = scmp.ne.s32.totalorder %s154, %s157
      %p163 = scmp.eq.s32.totalorder %s21, 0
      %p164 = por %p162, %p163
      %p165 = scmp.ne.s32.totalorder %s154, %s157
      %p166 = scmp.eq.s32.totalorder %s26, 7
      %p167 = por %p165, %p166
      %p168 = scmp.ne.s32.totalorder %s157, %s158
      %p169 = scmp.eq.s32.totalorder %s26, 0
      %p170 = por %p168, %p169
      %p171 = scmp.ne.s32.totalorder %s157, %s158
      %p172 = scmp.eq.s32.totalorder %s27, 7
      %p173 = por %p171, %p172
      %p175 = scmp.ne.s32.totalorder %s158, %s174
      %p176 = scmp.eq.s32.totalorder %s27, 0
      %p177 = por %p175, %p176
      %s178 = ssub.s32 %s29, %s43
      %p179 = scmp.eq.s32.totalorder %s178, 0
      %s181 = sadd.s32 %s180, 1
      %s182 = scalar_select %p179, %s180, %s181
      %p185 = pneg %p179
      %p186 = scmp.eq.s32.totalorder %s21, 7
      %p187 = por %p185, %p186
      %p188 = scmp.ne.s32.totalorder %s180, %s183
      %p189 = scmp.eq.s32.totalorder %s21, 0
      %p190 = por %p188, %p189
      %p191 = scmp.ne.s32.totalorder %s180, %s183
      %p192 = scmp.eq.s32.totalorder %s26, 7
      %p193 = por %p191, %p192
      %p194 = scmp.ne.s32.totalorder %s183, %s184
      %p195 = scmp.eq.s32.totalorder %s26, 0
      %p196 = por %p194, %p195
      %p197 = scmp.ne.s32.totalorder %s183, %s184
      %p198 = scmp.eq.s32.totalorder %s27, 7
      %p199 = por %p197, %p198
      %p201 = scmp.ne.s32.totalorder %s184, %s200
      %p202 = scmp.eq.s32.totalorder %s27, 0
      %p203 = por %p201, %p202
      %s204 = ssub.s32 %s29, %s43
      %p205 = scmp.eq.s32.totalorder %s204, 0
      %s207 = sadd.s32 %s206, 1
      %s208 = scalar_select %p205, %s206, %s207
      %p211 = pneg %p205
      %p212 = scmp.eq.s32.totalorder %s21, 7
      %p213 = por %p211, %p212
      %p214 = scmp.ne.s32.totalorder %s206, %s209
      %p215 = scmp.eq.s32.totalorder %s21, 0
      %p216 = por %p214, %p215
      %p217 = scmp.ne.s32.totalorder %s206, %s209
      %p218 = scmp.eq.s32.totalorder %s26, 7
      %p219 = por %p217, %p218
      %p220 = scmp.ne.s32.totalorder %s209, %s210
      %p221 = scmp.eq.s32.totalorder %s26, 0
      %p222 = por %p220, %p221
      %p223 = scmp.ne.s32.totalorder %s209, %s210
      %p224 = scmp.eq.s32.totalorder %s27, 7
      %p225 = por %p223, %p224
      %p227 = scmp.ne.s32.totalorder %s210, %s226
      %p228 = scmp.eq.s32.totalorder %s27, 0
      %p229 = por %p227, %p228
      %s230 = ssub.s32 %s28, %s47
      %s231 = ssub.s32 %s29, %s43
      %s232 = sor.u32 %s230, %s231
      %s233 = ssub.s32 %s30, %s39
      %s234 = sor.u32 %s232, %s233
      %p235 = scmp.eq.s32.totalorder %s234, 0
      %s237 = sadd.s32 %s236, 1
      %s238 = scalar_select %p235, %s236, %s237
      %p241 = pneg %p235
      %p242 = scmp.eq.s32.totalorder %s21, 7
      %p243 = por %p241, %p242
      %p244 = scmp.ne.s32.totalorder %s236, %s239
      %p245 = scmp.eq.s32.totalorder %s21, 0
      %p246 = por %p244, %p245
      %p247 = scmp.ne.s32.totalorder %s236, %s239
      %p248 = scmp.eq.s32.totalorder %s26, 7
      %p249 = por %p247, %p248
      %p250 = scmp.ne.s32.totalorder %s239, %s240
      %p251 = scmp.eq.s32.totalorder %s26, 0
      %p252 = por %p250, %p251
      %p253 = scmp.ne.s32.totalorder %s239, %s240
      %p254 = scmp.eq.s32.totalorder %s27, 7
      %p255 = por %p253, %p254
      %p257 = scmp.ne.s32.totalorder %s240, %s256
      %p258 = scmp.eq.s32.totalorder %s27, 0
      %p259 = por %p257, %p258
      %s260 = ssub.s32 %s28, %s47
      %s261 = ssub.s32 %s29, %s43
      %s262 = sor.u32 %s260, %s261
      %s263 = ssub.s32 %s30, %s39
      %s264 = sor.u32 %s262, %s263
      %p265 = scmp.eq.s32.totalorder %s264, 0
      %s267 = sadd.s32 %s266, 1
      %s268 = scalar_select %p265, %s266, %s267
      %p271 = pneg %p265
      %p272 = scmp.eq.s32.totalorder %s21, 7
      %p273 = por %p271, %p272
      %p274 = scmp.ne.s32.totalorder %s266, %s269
      %p275 = scmp.eq.s32.totalorder %s21, 0
      %p276 = por %p274, %p275
      %p277 = scmp.ne.s32.totalorder %s266, %s269
      %p278 = scmp.eq.s32.totalorder %s26, 7
      %p279 = por %p277, %p278
      %p280 = scmp.ne.s32.totalorder %s269, %s270
      %p281 = scmp.eq.s32.totalorder %s26, 0
      %p282 = por %p280, %p281
      %p283 = scmp.ne.s32.totalorder %s269, %s270
      %p284 = scmp.eq.s32.totalorder %s27, 7
      %p285 = por %p283, %p284
      %p287 = scmp.ne.s32.totalorder %s270, %s286
      %p288 = scmp.eq.s32.totalorder %s27, 0
      %p289 = por %p287, %p288
      %p290 = scmp.le.s32.totalorder 1, %s21
      %p291 = scmp.lt.s32.totalorder %s21, 9
      %p292 = pnand %p290, %p291
      %p293 = pneg %p292
      // Predicated region
      $region9: #{tpu_custom_call.1} parent=5 // pred_check
        _
      $region10: #{tpu_custom_call.1} parent=5 // pred_check_branch
        %295 = sbr.rel (%p292) target = $region12
      $region11: #{tpu_custom_call.1} parent=5 // pred_region
        %s296 = ssub.s32 %s21, 1
      $region12: #{tpu_custom_call.1} parent=5 // pred_fallthru
        _
      %p297 = scmp.lt.s32.totalorder %s21, 8
      // Predicated region
      $region13: #{tpu_custom_call.1} parent=5 // pred_check
        %p298 = pneg %p297
      $region14: #{tpu_custom_call.1} parent=5 // pred_check_branch
        %300 = sbr.rel (%p298) target = $region16
      $region15: #{tpu_custom_call.1} parent=5 // pred_region
        // Predicated region
        $region17: #{tpu_custom_call.1} parent=15 // pred_check
          %p301 = pneg %p60
        $region18: #{tpu_custom_call.1} parent=15 // pred_check_branch
          %303 = sbr.rel (%p301) target = $region20
        $region19: #{tpu_custom_call.1} parent=15 // pred_region
          %p304 = scmp.lt.s32.totalorder %s28, 1
          %s305 = scalar_select %p304, %s28, 1
          %s306 = smul.addr %s305, 8
          %s307 = scalar_lea.vmem %s0, %s306
        $region20: #{tpu_custom_call.1} parent=15 // pred_fallthru
          _
        // Predicated region
        $region21: #{tpu_custom_call.1} parent=15 // pred_check
          %p308 = pneg %p86
        $region22: #{tpu_custom_call.1} parent=15 // pred_check_branch
          %310 = sbr.rel (%p308) target = $region24
        $region23: #{tpu_custom_call.1} parent=15 // pred_region
          %p311 = scmp.lt.s32.totalorder %s28, 1
          %s312 = scalar_select %p311, %s28, 1
          %s313 = smul.addr %s312, 8
          %s314 = scalar_lea.vmem %s1, %s313
        $region24: #{tpu_custom_call.1} parent=15 // pred_fallthru
          _
        // Predicated region
        $region25: #{tpu_custom_call.1} parent=15 // pred_check
          %p315 = pneg %p112
        $region26: #{tpu_custom_call.1} parent=15 // pred_check_branch
          %317 = sbr.rel (%p315) target = $region28
        $region27: #{tpu_custom_call.1} parent=15 // pred_region
          %p318 = scmp.lt.s32.totalorder %s29, 3
          %s319 = scalar_select %p318, %s29, 3
          %s320 = smul.addr %s319, 4
          %s321 = smul.addr %s320, 8
          %s322 = scalar_lea.vmem %s2, %s321
        $region28: #{tpu_custom_call.1} parent=15 // pred_fallthru
          _
        // Predicated region
        $region29: #{tpu_custom_call.1} parent=15 // pred_check
          %p323 = pneg %p138
        $region30: #{tpu_custom_call.1} parent=15 // pred_check_branch
          %325 = sbr.rel (%p323) target = $region32
        $region31: #{tpu_custom_call.1} parent=15 // pred_region
          %p326 = scmp.lt.s32.totalorder %s29, 3
          %s327 = scalar_select %p326, %s29, 3
          %s328 = scalar_lea.vmem %s3, %s327
        $region32: #{tpu_custom_call.1} parent=15 // pred_fallthru
          _
        // Predicated region
        $region33: #{tpu_custom_call.1} parent=15 // pred_check
          %p329 = pneg %p164
        $region34: #{tpu_custom_call.1} parent=15 // pred_check_branch
          %331 = sbr.rel (%p329) target = $region36
        $region35: #{tpu_custom_call.1} parent=15 // pred_region
          %p332 = scmp.lt.s32.totalorder %s29, 3
          %s333 = scalar_select %p332, %s29, 3
          %s334 = smul.addr %s333, 4
          %s335 = smul.addr %s334, 8
          %s336 = scalar_lea.vmem %s4, %s335
        $region36: #{tpu_custom_call.1} parent=15 // pred_fallthru
          _
        // Predicated region
        $region37: #{tpu_custom_call.1} parent=15 // pred_check
          %p337 = pneg %p190
        $region38: #{tpu_custom_call.1} parent=15 // pred_check_branch
          %339 = sbr.rel (%p337) target = $region40
        $region39: #{tpu_custom_call.1} parent=15 // pred_region
          %p340 = scmp.lt.s32.totalorder %s29, 3
          %s341 = scalar_select %p340, %s29, 3
          %s342 = smul.addr %s341, 4
          %s343 = smul.addr %s342, 8
          %s344 = scalar_lea.vmem %s5, %s343
        $region40: #{tpu_custom_call.1} parent=15 // pred_fallthru
          _
        // Predicated region
        $region41: #{tpu_custom_call.1} parent=15 // pred_check
          %p345 = pneg %p216
        $region42: #{tpu_custom_call.1} parent=15 // pred_check_branch
          %347 = sbr.rel (%p345) target = $region44
        $region43: #{tpu_custom_call.1} parent=15 // pred_region
          %p348 = scmp.lt.s32.totalorder %s29, 3
          %s349 = scalar_select %p348, %s29, 3
          %s350 = scalar_lea.vmem %s6, %s349
        $region44: #{tpu_custom_call.1} parent=15 // pred_fallthru
          _
      $region16: #{tpu_custom_call.1} parent=5 // pred_fallthru
        _
      %p351 = scmp.le.s32.totalorder 1, %s21
      %p352 = scmp.lt.s32.totalorder %s21, 9
      %p353 = pnand %p351, %p352
      %p354 = pneg %p353
      // Predicated region
      $region45: #{tpu_custom_call.1} parent=5 // pred_check
        _
      $region46: #{tpu_custom_call.1} parent=5 // pred_check_branch
        %356 = sbr.rel (%p353) target = $region48
      $region47: #{tpu_custom_call.1} parent=5 // pred_region
        %s357 = ssub.s32 %s21, 1
        %p358 = scmp.lt.s32.totalorder %s31, 1
        %s359 = scalar_select %p358, %s31, 1
        %s360 = smul.addr %s359, 8
        %s361 = scalar_lea.vmem %s0, %s360
        %p362 = pneg %p66
        %p363 = pneg %p63
        %p364 = scmp.lt.s32.totalorder %s31, 1
        %s365 = scalar_select %p364, %s31, 1
        %s366 = smul.addr %s365, 8
        %s367 = scalar_lea.vmem %s1, %s366
        %p368 = pneg %p92
        %p369 = pneg %p89
        %p370 = scmp.lt.s32.totalorder %s32, 3
        %s371 = scalar_select %p370, %s32, 3
        %s372 = smul.addr %s371, 4
        %s373 = smul.addr %s372, 8
        %s374 = scalar_lea.vmem %s2, %s373
        %p375 = pneg %p118
        %p376 = pneg %p115
        %p377 = scmp.lt.s32.totalorder %s32, 3
        %s378 = scalar_select %p377, %s32, 3
        %s379 = scalar_lea.vmem %s3, %s378
        %p380 = pneg %p144
        %p381 = pneg %p141
        %p382 = scmp.lt.s32.totalorder %s32, 3
        %s383 = scalar_select %p382, %s32, 3
        %s384 = smul.addr %s383, 4
        %s385 = smul.addr %s384, 8
        %s386 = scalar_lea.vmem %s4, %s385
        %p387 = pneg %p170
        %p388 = pneg %p167
        %p389 = scmp.lt.s32.totalorder %s32, 3
        %s390 = scalar_select %p389, %s32, 3
        %s391 = smul.addr %s390, 4
        %s392 = smul.addr %s391, 8
        %s393 = scalar_lea.vmem %s5, %s392
        %p394 = pneg %p196
        %p395 = pneg %p193
        %p396 = scmp.lt.s32.totalorder %s32, 3
        %s397 = scalar_select %p396, %s32, 3
        %s398 = scalar_lea.vmem %s6, %s397
        %p399 = pneg %p222
        %p400 = pneg %p219
        %p401 = pneg %p252
        %p402 = pneg %p249
        %s403 = sand.u32 %s239, 1
        %s404 = scalar_lea.sflag [#allocation5], %s403
        %s405 = sand.u32 %s239, 1
        %s406 = smul.addr %s405, 8
        %s407 = scalar_lea.vmem [#allocation4], %s406
        %p408 = pneg %p282
        %p409 = pneg %p279
        %s410 = sand.u32 %s269, 1
        %s411 = scalar_lea.sflag [#allocation7], %s410
        %s412 = sand.u32 %s269, 1
        %s413 = smul.addr %s412, 8
        %s414 = scalar_lea.vmem [#allocation6], %s413
        %p415 = scmp.lt.s32.totalorder %s31, 1
        %s416 = scalar_select %p415, %s31, 1
        %s417 = smul.addr %s416, 8
        %s418 = scalar_lea.vmem %s0, %s417
        %p419 = scmp.lt.s32.totalorder %s31, 1
        %s420 = scalar_select %p419, %s31, 1
        %s421 = smul.addr %s420, 8
        %s422 = scalar_lea.vmem %s1, %s421
        %p423 = scmp.lt.s32.totalorder %s32, 3
        %s424 = scalar_select %p423, %s32, 3
        %s425 = smul.addr %s424, 4
        %s426 = smul.addr %s425, 8
        %s427 = scalar_lea.vmem %s2, %s426
        %p428 = scmp.lt.s32.totalorder %s32, 3
        %s429 = scalar_select %p428, %s32, 3
        %s430 = scalar_lea.vmem %s3, %s429
        %p431 = scmp.lt.s32.totalorder %s32, 3
        %s432 = scalar_select %p431, %s32, 3
        %s433 = smul.addr %s432, 4
        %s434 = smul.addr %s433, 8
        %s435 = scalar_lea.vmem %s4, %s434
        %p436 = scmp.lt.s32.totalorder %s32, 3
        %s437 = scalar_select %p436, %s32, 3
        %s438 = smul.addr %s437, 4
        %s439 = smul.addr %s438, 8
        %s440 = scalar_lea.vmem %s5, %s439
        %p441 = scmp.lt.s32.totalorder %s32, 3
        %s442 = scalar_select %p441, %s32, 3
        %s443 = scalar_lea.vmem %s6, %s442
        %p444 = scmp.eq.s32.totalorder %s33, 0
        // Predicated region
        $region49: #{tpu_custom_call.1} parent=47 // pred_check
          %p445 = pneg %p444
        $region50: #{tpu_custom_call.1} parent=47 // pred_check_branch
          %447 = sbr.rel (%p445) target = $region52
        $region51: #{tpu_custom_call.1} parent=47 // pred_region
          %v448 = vld [vmem:[%s422] sm:$0xff]
          %v449 = vld [vmem:[%s435] sm:$0xff]
          %v450 = vld [vmem:[%s435 + $0x8] sm:$0xff]
          %v451 = vld [vmem:[%s435 + $0x10] sm:$0xff]
          %v452 = vld [vmem:[%s435 + $0x18] sm:$0xff]
          %vm453 = vcmask 261120
          %v455 = vsel %vm453, %v448, 0
          %457 = vmatpush.msra.mxu0 0.0
          %458 = vmatpush.msra.mxu0 0.0
          %459 = vmatpush.msra.mxu0 0.0
          %460 = vmatpush.msra.mxu0 0.0
          %461 = vmatpush.msra.mxu0 0.0
          %462 = vmatpush.msra.mxu0 0.0
          %463 = vmatpush.msra.mxu0 0.0
          %464 = vmatpush.msra.mxu0 0.0
          %465 = vmatpush.msra.mxu0 0.0
          %466 = vmatpush.msra.mxu0 0.0
          %467 = vmatpush.msra.mxu0 0.0
          %468 = vmatpush.msra.mxu0 0.0
          %469 = vmatpush.msra.mxu0 %v452
          %470 = vmatpush.msra.mxu0 %v451
          %471 = vmatpush.msra.mxu0 %v450
          %472 = vmatpush.msra.mxu0 %v449
          %473 = vmatmul.f32.gmra.mxu0 %v455
          %v474 = vpop.f32.mrf.mxu0
          %v475 = vadd.f32 0.0, %v474
          %476 = vdwg.mxu0
          %vm477 = vcmask 64512
          %478 = vst.msk [vmem:[#allocation2] sm:$0xff] %vm477, %v475
          %v479 = vld [vmem:[%s440] sm:$0xff]
          %v480 = vld [vmem:[%s440 + $0x8] sm:$0xff]
          %v481 = vld [vmem:[%s440 + $0x10] sm:$0xff]
          %v482 = vld [vmem:[%s440 + $0x18] sm:$0xff]
          %v483 = vld [vmem:[%s443] sm:$0x1]
          %v485 = vperm.slane %v483, 0
          %487 = vmatpush.msra.mxu0 0.0
          %488 = vmatpush.msra.mxu0 0.0
          %489 = vmatpush.msra.mxu0 0.0
          %490 = vmatpush.msra.mxu0 0.0
          %491 = vmatpush.msra.mxu0 0.0
          %492 = vmatpush.msra.mxu0 0.0
          %493 = vmatpush.msra.mxu0 0.0
          %494 = vmatpush.msra.mxu0 0.0
          %495 = vmatpush.msra.mxu0 0.0
          %496 = vmatpush.msra.mxu0 0.0
          %497 = vmatpush.msra.mxu0 0.0
          %498 = vmatpush.msra.mxu0 0.0
          %499 = vmatpush.msra.mxu0 %v482
          %500 = vmatpush.msra.mxu0 %v481
          %501 = vmatpush.msra.mxu0 %v480
          %502 = vmatpush.msra.mxu0 %v479
          %503 = vmatmul.f32.gmra.mxu0 %v455
          %v504 = vpop.f32.mrf.mxu0
          %v505 = vadd.f32 %v485, %v504
          %506 = vdwg.mxu0
          %507 = vst.msk [vmem:[#allocation3] sm:$0xff] %vm477, %v505
        $region52: #{tpu_custom_call.1} parent=47 // pred_fallthru
          _
        %s508 = smul.u32 %s33, 8
        %s509 = scalar_lea.vmem %s418, %s508
        %v510 = vld [vmem:[%s509] sm:$0xff]
        %v511 = vld [vmem:[%s427] sm:$0xff]
        %v512 = vld [vmem:[%s427 + $0x8] sm:$0xff]
        %v513 = vld [vmem:[%s427 + $0x10] sm:$0xff]
        %v514 = vld [vmem:[%s427 + $0x18] sm:$0xff]
        %v515 = vld [vmem:[%s430] sm:$0x1]
        %v517 = vperm.slane %v515, 0
        %vm519 = vcmask 261120
        %v521 = vsel %vm519, %v510, 0
        %523 = vmatpush.msra.mxu0 0.0
        %524 = vmatpush.msra.mxu0 0.0
        %525 = vmatpush.msra.mxu0 0.0
        %526 = vmatpush.msra.mxu0 0.0
        %527 = vmatpush.msra.mxu0 0.0
        %528 = vmatpush.msra.mxu0 0.0
        %529 = vmatpush.msra.mxu0 0.0
        %530 = vmatpush.msra.mxu0 0.0
        %531 = vmatpush.msra.mxu0 0.0
        %532 = vmatpush.msra.mxu0 0.0
        %533 = vmatpush.msra.mxu0 0.0
        %534 = vmatpush.msra.mxu0 0.0
        %535 = vmatpush.msra.mxu0 %v514
        %536 = vmatpush.msra.mxu0 %v513
        %537 = vmatpush.msra.mxu0 %v512
        %538 = vmatpush.msra.mxu0 %v511
        %539 = vmatmul.f32.gmra.mxu0 %v521
        %v540 = vpop.f32.mrf.mxu0
        %v541 = vadd.f32 %v517, %v540
        %542 = vdwg.mxu0
        %v543 = vld [vmem:[#allocation2] sm:$0xff]
        %vm544 = vcmask 64512
        %v546 = vsel %vm544, %v541, 0
        %v549 = vsel %vm544, %v543, 0
        %551 = vmatpush.xpose.msra.mxu0 0.0
        %552 = vmatpush.xpose.msra.mxu0 0.0
        %553 = vmatpush.xpose.msra.mxu0 0.0
        %554 = vmatpush.xpose.msra.mxu0 0.0
        %555 = vmatpush.xpose.msra.mxu0 0.0
        %556 = vmatpush.xpose.msra.mxu0 0.0
        %557 = vmatpush.xpose.msra.mxu0 0.0
        %558 = vmatpush.xpose.msra.mxu0 0.0
        %559 = vmatpush.xpose.msra.mxu0 0.0
        %560 = vmatpush.xpose.msra.mxu0 0.0
        %561 = vmatpush.xpose.msra.mxu0 0.0
        %562 = vmatpush.xpose.msra.mxu0 0.0
        %563 = vmatpush.xpose.msra.mxu0 0.0
        %564 = vmatpush.xpose.msra.mxu0 0.0
        %565 = vmatpush.xpose.msra.mxu0 0.0
        %566 = vmatpush.xpose.msra.mxu0 %v549
        %567 = vmatmul.f32.gmra.mxu0 %v546
        %v568 = vpop.f32.mrf.mxu0
        %v569 = vadd.f32 0.0, %v568
        %570 = vdwg.mxu0
        %571 = vst.msk [vmem:[%s407] sm:$0xff] %vm544, %v569
        %v572 = vsel %vm544, %v569, -inf
        %573 = vmax.xlane.f32.xlu0 %v572
        %v574 = vpop.xlane.xlu0 %573
        %v575 = vsub.f32 %v569, %v574
        %v576 = vmul.f32 %v575, 1.442695
        %v577 = vpow.pop %v576
        %v578 = vsel %vm544, %v577, 0.0
        %579 = vadd.xlane.f32.xlu0 %v578
        %v580 = vpop.xlane.xlu0 %579
        %v581 = vld [vmem:[#allocation3] sm:$0xff]
        %v583 = vsel %vm544, %v577, 0
        %585 = vmatpush.msra.mxu0 0.0
        %586 = vmatpush.msra.mxu0 0.0
        %587 = vmatpush.msra.mxu0 0.0
        %588 = vmatpush.msra.mxu0 0.0
        %589 = vmatpush.msra.mxu0 0.0
        %590 = vmatpush.msra.mxu0 0.0
        %591 = vmatpush.msra.mxu0 0.0
        %592 = vmatpush.msra.mxu0 0.0
        %593 = vmatpush.msra.mxu0 0.0
        %594 = vmatpush.msra.mxu0 0.0
        %595 = vmatpush.msra.mxu0 0.0
        %596 = vmatpush.msra.mxu0 0.0
        %597 = vmatpush.msra.mxu0 0.0
        %598 = vmatpush.msra.mxu0 0.0
        %599 = vmatpush.msra.mxu0 0.0
        %600 = vmatpush.msra.mxu0 %v581
        %601 = vmatmul.f32.gmra.mxu0 %v583
        %v602 = vpop.f32.mrf.mxu0
        %v603 = vadd.f32 0.0, %v602
        %604 = vdwg.mxu0
        %v605 = vrcp.pop %v580
        %v606 = vmul.f32 %v603, %v605
        %607 = vst.msk [vmem:[%s414] sm:$0xff] %vm544, %v606
        %s608 = sand.u32 %s239, 1
        %s609 = scalar_lea.sflag [#allocation5], %s608
        %s610 = sand.u32 %s239, 1
        %s611 = smul.addr %s610, 8
        %s612 = scalar_lea.vmem [#allocation4], %s611
        %s613 = sand.u32 %s269, 1
        %s614 = scalar_lea.sflag [#allocation7], %s613
        %s615 = sand.u32 %s269, 1
        %s616 = smul.addr %s615, 8
        %s617 = scalar_lea.vmem [#allocation6], %s616
        // Predicated region
        $region53: #{tpu_custom_call.1} parent=47 // pred_check
          %p618 = pneg %p249
        $region54: #{tpu_custom_call.1} parent=47 // pred_check_branch
          %620 = sbr.rel (%p618) target = $region56
        $region55: #{tpu_custom_call.1} parent=47 // pred_region
          %622 = vsyncadd %s609, 0
          %s623 = sadd.s32 %s33, %s32
          %s624 = smul.addr %s31, 4
          %s625 = sadd.s32 %s623, %s624
          %s626 = smul.addr %s625, 8
          %s627 = scalar_lea.hbm %s7, %s626
          %s629 = sshll.u32 %s612, 4
          %s630 = int_to_ptr.vmem [resolvable:$true] %s629
          %s631 = sshll.u32 %s627, 4
          %s632 = int_to_ptr.hbm [resolvable:$true] %s631
          %634 = dma.vmem_to_hbm [thread:$0]  %s630, 128, %s632, %s609
        $region56: #{tpu_custom_call.1} parent=47 // pred_fallthru
          _
        // Predicated region
        $region57: #{tpu_custom_call.1} parent=47 // pred_check
          %p635 = pneg %p279
        $region58: #{tpu_custom_call.1} parent=47 // pred_check_branch
          %637 = sbr.rel (%p635) target = $region60
        $region59: #{tpu_custom_call.1} parent=47 // pred_region
          %639 = vsyncadd %s614, 0
          %s640 = sadd.s32 %s33, %s32
          %s641 = smul.addr %s31, 4
          %s642 = sadd.s32 %s640, %s641
          %s643 = smul.addr %s642, 8
          %s644 = scalar_lea.hbm %s8, %s643
          %s646 = sshll.u32 %s617, 4
          %s647 = int_to_ptr.vmem [resolvable:$true] %s646
          %s648 = sshll.u32 %s644, 4
          %s649 = int_to_ptr.hbm [resolvable:$true] %s648
          %651 = dma.vmem_to_hbm [thread:$0]  %s647, 128, %s649, %s614
        $region60: #{tpu_custom_call.1} parent=47 // pred_fallthru
          _
      $region48: #{tpu_custom_call.1} parent=5 // pred_fallthru
        _
      %p652 = scmp.le.s32.totalorder 2, %s21
      // Predicated region
      $region61: #{tpu_custom_call.1} parent=5 // pred_check
        %p653 = pneg %p652
      $region62: #{tpu_custom_call.1} parent=5 // pred_check_branch
        %655 = sbr.rel (%p653) target = $region64
      $region63: #{tpu_custom_call.1} parent=5 // pred_region
        %s656 = ssub.s32 %s21, 2
        // Predicated region
        $region65: #{tpu_custom_call.1} parent=63 // pred_check
          %p657 = pneg %p255
        $region66: #{tpu_custom_call.1} parent=63 // pred_check_branch
          %659 = sbr.rel (%p657) target = $region68
        $region67: #{tpu_custom_call.1} parent=63 // pred_region
          %s660 = sand.u32 %s240, 1
          %s661 = scalar_lea.sflag [#allocation5], %s660
          %s662 = sand.u32 %s240, 1
          %s663 = smul.addr %s662, 8
          %s664 = scalar_lea.vmem [#allocation4], %s663
          %666 = dma.done %s661, 128
        $region68: #{tpu_custom_call.1} parent=63 // pred_fallthru
          _
        // Predicated region
        $region69: #{tpu_custom_call.1} parent=63 // pred_check
          %p667 = pneg %p285
        $region70: #{tpu_custom_call.1} parent=63 // pred_check_branch
          %669 = sbr.rel (%p667) target = $region72
        $region71: #{tpu_custom_call.1} parent=63 // pred_region
          %s670 = sand.u32 %s270, 1
          %s671 = scalar_lea.sflag [#allocation7], %s670
          %s672 = sand.u32 %s270, 1
          %s673 = smul.addr %s672, 8
          %s674 = scalar_lea.vmem [#allocation6], %s673
          %676 = dma.done %s671, 128
        $region72: #{tpu_custom_call.1} parent=63 // pred_fallthru
          _
      $region64: #{tpu_custom_call.1} parent=5 // pred_fallthru
        _
    $region6: #{tpu_custom_call.1} parent=1 // loop_footer
      %s25 = sadd.s32 1, %s21
    $region7: #{tpu_custom_call.1} parent=1 // loop_footer_branch
      %20 = sbr.rel target = $region3
    $region8: #{tpu_custom_call.1} parent=1 // loop_exit
      _
    %677 = vsyncpa [#allocation5], 1
    %s678 = scalar_lea.sflag [#allocation5], 1
    %679 = vsyncpa %s678, 1
    %680 = vsyncpa [#allocation7], 1
    %s681 = scalar_lea.sflag [#allocation7], 1
    %682 = vsyncpa %s681, 1

</llo_original>
